<compile_context>
chip_gen: v7x
topology: tpu7x:2x2x1
jax: 0.10.0
libtpu: 0.0.40
codegen_flags: <defaults>
</compile_context>

<pallas_src>
import jax
import jax.numpy as jnp
from jax.experimental import pallas as pl
from jax.experimental.pallas import tpu as pltpu


# Preferred (large-problem) tile sizes; shrunk/aligned automatically for small shapes.
_TM, _TN, _TK = 512, 1024, 512


def _round_up(x, m):
    return (x + m - 1) // m * m


def _pick_tile(dim, preferred, align):
    return preferred if dim >= preferred else _round_up(dim, align)


def _quant_row_tile(tm, kp):
    """Row tile for the fake-quant pass: divides tm, keeps double-buffered VMEM small."""
    budget = 20 * 1024 * 1024  # bytes for 2 x (f32 in + int8 out) tiles
    t = min(tm, 256)
    while tm % t:
        t //= 2
    while t > 32 and 2 * t * kp * 5 > budget and tm % (t // 2) == 0:
        t //= 2
    return max(t, 8)


# --------------------------------------------------------------------------------------
# Kernels
# --------------------------------------------------------------------------------------

def _fake_quant_kernel(x_ref, q_ref, s_ref):
    """Per-token absmax fake quantization.

    x_ref: (tmq, Kp) f32  ->  q_ref: (tmq, Kp) int8,  s_ref: (tmq, 1) f32
    """
    x = x_ref[...]
    absmax = jnp.max(jnp.abs(x), axis=-1, keepdims=True)
    scale = jnp.maximum(absmax, 1e-8) / 127.0      # matches torch clamp(min=1e-8)/q_max
    # Exact divide so the rounding bit-matches the torch path; pl.reciprocal(scale,
    # approx=True) is a drop-in EUP saving if bit-identical rounding is not required
    # (this pass is HBM-bound either way).
    q_ref[...] = jnp.round(x / scale).astype(jnp.int8)
    s_ref[...] = scale


def _scaled_matmul_kernel(q_ref, w_ref, sx_ref, sw_ref, b_ref, o_ref, acc_ref):
    """o = (q @ w) * sx * sw + b, accumulated over the K grid axis.

    q_ref : (tm, tk) int8                   w_ref : (tk, tn) int8 (pre-transposed [K,N])
    sx_ref: (tm, 1)  f32 per-token scale    sw_ref: (1, tn)  f32 per-channel scale
    b_ref : (1, tn)  f32 bias               o_ref : (tm, tn) out_dtype
    acc_ref: (tm, tn) f32 VMEM scratch (resident across the K axis)
    """
    k = pl.program_id(2)

    @pl.when(k == 0)
    def _():
        acc_ref[...] = jnp.zeros_like(acc_ref)

    # int8 in HBM/VMEM, widened to bf16 after the DMA (exact: |values| <= 127).
    # bf16 x bf16 -> f32 MXU path works on v5e / v6e / v7x.
    a = q_ref[...].astype(jnp.bfloat16)
    b = w_ref[...].astype(jnp.bfloat16)
    acc_ref[...] += jnp.dot(a, b, preferred_element_type=jnp.float32)

    @pl.when(k == pl.num_programs(2) - 1)
    def _():
        o_ref[...] = (acc_ref[...] * sx_ref[...] * sw_ref[...]
                      + b_ref[...]).astype(o_ref.dtype)


# --------------------------------------------------------------------------------------
# Wrappers
# --------------------------------------------------------------------------------------

def prepare_w8_weights(weight, weight_scales, bias, *, tn=None, tk=None):
    """One-time weight transform: int8 [N,K] -> padded int8 [Kp,Np] (+ padded scales/bias)."""
    N, K = weight.shape
    tn = tn if tn is not None else _pick_tile(N, _TN, 128)
    tk = tk if tk is not None else _pick_tile(K, _TK, 128)
    Np, Kp = _round_up(N, tn), _round_up(K, tk)
    w_kn = jnp.pad(weight.T, ((0, Kp - K), (0, Np - N)))                 # int8, once
    sw = jnp.pad(weight_scales.astype(jnp.float32).reshape(1, N),
                 ((0, 0), (0, Np - N)))
    b = (jnp.zeros((1, N), jnp.float32) if bias is None
         else bias.astype(jnp.float32).reshape(1, N))
    bp = jnp.pad(b, ((0, 0), (0, Np - N)))
    return dict(w_kn=w_kn, sw=sw, bias=bp, N=N, K=K, tn=tn, tk=tk)


def w8fakea8_linear_prepared(x, prep, *, act_quant="per_token", out_dtype=jnp.float32):
    w_kn, sw, bp = prep["w_kn"], prep["sw"], prep["bias"]
    N, K, tn, tk = prep["N"], prep["K"], prep["tn"], prep["tk"]
    Kp, Np = w_kn.shape

    orig_shape = x.shape
    assert orig_shape[-1] == K, "in_features mismatch"
    x2 = x.reshape(-1, K).astype(jnp.float32)
    M = x2.shape[0]

    tm = _pick_tile(M, _TM, 32)       # 32: int8 sublane packing for the q operand
    Mp = _round_up(M, tm)
    x2p = jnp.pad(x2, ((0, Mp - M), (0, Kp - K)))

    if act_quant == "per_token":
        tmq = _quant_row_tile(tm, Kp)
        q, sx = pl.pallas_call(
            _fake_quant_kernel,
            out_shape=(jax.ShapeDtypeStruct((Mp, Kp), jnp.int8),
                       jax.ShapeDtypeStruct((Mp, 1), jnp.float32)),
            grid=(Mp // tmq,),
            in_specs=[pl.BlockSpec((tmq, Kp), lambda i: (i, 0))],
            out_specs=(pl.BlockSpec((tmq, Kp), lambda i: (i, 0)),
                       pl.BlockSpec((tmq, 1), lambda i: (i, 0))),
            compiler_params=pltpu.CompilerParams(
                dimension_semantics=("parallel",),
                vmem_limit_bytes=48 * 1024 * 1024),
        )(x2p)
    elif act_quant == "per_tensor":
        # TODO(synk): the whole-tensor absmax is a global scalar reduction; it stays in
        # XLA and only the quantize + scaled matmul run through Pallas.
        s = jnp.maximum(jnp.max(jnp.abs(x2)), 1e-8) / 127.0
        q = jnp.round(x2p / s).astype(jnp.int8)
        sx = jnp.full((Mp, 1), s, jnp.float32)
    else:
        raise ValueError('act_quant must be "per_token" or "per_tensor"')

    out_bytes = jnp.dtype(out_dtype).itemsize
    out = pl.pallas_call(
        _scaled_matmul_kernel,
        out_shape=jax.ShapeDtypeStruct((Mp, Np), out_dtype),
        grid=(Mp // tm, Np // tn, Kp // tk),
        in_specs=[
            pl.BlockSpec((tm, tk), lambda i, j, k: (i, k)),
            pl.BlockSpec((tk, tn), lambda i, j, k: (k, j)),
            pl.BlockSpec((tm, 1), lambda i, j, k: (i, 0)),
            pl.BlockSpec((1, tn), lambda i, j, k: (0, j)),
            pl.BlockSpec((1, tn), lambda i, j, k: (0, j)),
        ],
        out_specs=pl.BlockSpec((tm, tn), lambda i, j, k: (i, j)),
        scratch_shapes=[pltpu.VMEM((tm, tn), jnp.float32)],
        compiler_params=pltpu.CompilerParams(
            dimension_semantics=("parallel", "parallel", "arbitrary"),
            vmem_limit_bytes=48 * 1024 * 1024,
        ),
        # TODO(synk): on v5e, pipeline_mode=pl.Buffered(3) on the weight stream if
        # profiling shows exposed DMA.
        cost_estimate=pl.CostEstimate(
            flops=2 * Mp * Np * Kp,
            transcendentals=0,
            bytes_accessed=((Np // tn) * Mp * Kp * 1      # q re-read per N tile (int8)
                            + (Mp // tm) * Kp * Np * 1    # w re-read per M tile (int8)
                            + Mp * Np * out_bytes         # output writeback
                            + Np * 8 + Mp * 4),           # scales + bias
        ),
    )(q, w_kn, sx, sw, bp)

    return out[:M, :N].reshape(*orig_shape[:-1], N)


def w8fakea8_linear(x, weight, weight_scales, bias=None, act_quant="per_token",
                    out_dtype=jnp.float32):
    """Convenience wrapper: x: [..., K] float; weight: int8 [N, K]; weight_scales: [N]."""
    prep = prepare_w8_weights(weight, weight_scales, bias)
    return w8fakea8_linear_prepared(x, prep, act_quant=act_quant, out_dtype=out_dtype)


class W8FakeA8Linear:
    """JAX mirror of the PyTorch module (deterministic synthetic init).

    The int8 weight is transposed/padded ONCE at init/load time (not per forward call).
    Output dtype defaults to f32 (torch returns fp16; pass out_dtype=jnp.float16/bfloat16).
    """

    def __init__(self, in_features, out_features, bias=True, act_quant="per_token",
                 *, key, out_dtype=jnp.float32):
        if act_quant not in ("per_token", "per_tensor"):
            raise ValueError('act_quant must be "per_token" or "per_tensor"')
        self.in_features = in_features
        self.out_features = out_features
        self.act_quant = act_quant
        self.out_dtype = out_dtype
        # torch.randint(-127, 127, ...) -> high bound exclusive
        self.weight = jax.random.randint(
            key, (out_features, in_features), -127, 127, dtype=jnp.int8)
        self.weight_scales = jnp.ones((out_features,), jnp.float32)
        self.bias = jnp.zeros((1, out_features), jnp.float32) if bias else None
        self._prepare()

    def load(self, weight=None, weight_scales=None, bias=None):
        """Override parameters and re-run the one-time weight prep."""
        if weight is not None:
            self.weight = weight
        if weight_scales is not None:
            self.weight_scales = weight_scales
        if bias is not None:
            self.bias = bias
        self._prepare()
        return self

    def _prepare(self):
        self._prep = prepare_w8_weights(self.weight, self.weight_scales, self.bias)

    def __call__(self, x):
        return w8fakea8_linear_prepared(x, self._prep, act_quant=self.act_quant,
                                        out_dtype=self.out_dtype)


def _reference(x, weight, weight_scales, bias, act_quant):
    """Pure-JAX fp32 mirror of the PyTorch forward."""
    w_fp = weight.astype(jnp.float32) * weight_scales.astype(jnp.float32)[:, None]
    if act_quant == "per_token":
        absmax = jnp.max(jnp.abs(x), axis=-1, keepdims=True)
    else:
        absmax = jnp.max(jnp.abs(x))
    scale = jnp.maximum(absmax, 1e-8) / 127.0
    x_fq = jnp.round(x / scale) * scale
    y = jnp.einsum("...k,nk->...n", x_fq, w_fp,
                   precision=jax.lax.Precision.HIGHEST)
    if bias is not None:
        y = y + bias.astype(jnp.float32).reshape((1,) * (y.ndim - 1) + (-1,))
    return y


if __name__ == "__main__":
    key = jax.random.PRNGKey(0)
    k_w, k_s, k_b, k_x, k_w2, k_s2, k_b2, k_x2 = jax.random.split(key, 8)

    # --- Test 1: small per-token shape (single-block grid, padded M/N/K) ---------------
    batch, seq, in_features, out_features = 2, 8, 32, 64
    mod = W8FakeA8Linear(in_features, out_features, bias=True,
                         act_quant="per_token", key=k_w)
    mod.load(weight_scales=jax.random.uniform(k_s, (out_features,), jnp.float32, 0.5, 1.5),
             bias=jax.random.normal(k_b, (1, out_features), jnp.float32))
    x = jax.random.normal(k_x, (batch, seq, in_features), jnp.float32)

    y = jax.block_until_ready(mod(x))
    ref = _reference(x, mod.weight, mod.weight_scales, mod.bias, "per_token")
    assert y.shape == (batch, seq, out_features), y.shape
    assert y.dtype == jnp.float32, y.dtype
    assert jnp.allclose(y, ref, atol=5e-2, rtol=1e-4), float(jnp.max(jnp.abs(y - ref)))

    # --- Test 2: per-tensor quant, no bias --------------------------------------------
    mod_pt = W8FakeA8Linear(in_features, out_features, bias=False,
                            act_quant="per_tensor", key=k_w)
    y2 = jax.block_until_ready(mod_pt(x))
    ref2 = _reference(x, mod_pt.weight, mod_pt.weight_scales, None, "per_tensor")
    assert jnp.allclose(y2, ref2, atol=5e-2, rtol=1e-4), float(jnp.max(jnp.abs(y2 - ref2)))

    # --- Test 3: shape that exercises the tiled K-reduction + N padding ---------------
    b3, s3, in3, out3 = 2, 32, 1536, 300         # M=64, Kp=1536 (3 K steps), Np=384
    mod3 = W8FakeA8Linear(in3, out3, bias=True, act_quant="per_token", key=k_w2)
    mod3.load(weight_scales=jax.random.uniform(k_s2, (out3,), jnp.float32, 0.5, 1.5),
              bias=jax.random.normal(k_b2, (1, out3), jnp.float32))
    x3 = jax.random.normal(k_x2, (b3, s3, in3), jnp.float32)

    y3 = jax.block_until_ready(mod3(x3))
    ref3 = _reference(x3, mod3.weight, mod3.weight_scales, mod3.bias, "per_token")
    assert y3.shape == (b3, s3, out3), y3.shape
    assert jnp.allclose(y3, ref3, atol=1.0, rtol=1e-3), float(jnp.max(jnp.abs(y3 - ref3)))

    print("KERNEL_OK")
</pallas_src>

<mosaic_0001>
module attributes {stable_mosaic.version = 11 : i64} {
  func.func @_fake_quant_kernel(%arg0: i32, %arg1: memref<32x128xf32, #tpu.memory_space<vmem>>, %arg2: memref<32x128xi8, #tpu.memory_space<vmem>>, %arg3: memref<32x1xf32, #tpu.memory_space<vmem>>) attributes {dimension_semantics = [#tpu.dimension_semantics<parallel>], iteration_bounds = array<i64: 1>, scalar_prefetch = 0 : i64, scratch_operands = 0 : i64, tpu.core_type = #tpu.core_type<tc>, window_params = [{transform_indices = @transform_0, window_bounds = array<i64: 32, 128>}, {transform_indices = @transform_1, window_bounds = array<i64: 32, 128>}, {transform_indices = @transform_2, window_bounds = array<i64: 32, 1>}]} {
    %c0 = arith.constant 0 : index
    %c0_0 = arith.constant 0 : index
    %0 = vector.load %arg1[%c0, %c0_0] : memref<32x128xf32, #tpu.memory_space<vmem>>, vector<32x128xf32>
    %1 = math.absf %0 : vector<32x128xf32>
    %cst = arith.constant dense<0xFF800000> : vector<32xf32>
    %2 = vector.multi_reduction <maximumf>, %1, %cst [1] : vector<32x128xf32> to vector<32xf32>
    %3 = vector.shape_cast %2 : vector<32xf32> to vector<32x1xf32>
    %cst_1 = arith.constant 9.99999993E-9 : f32
    %4 = vector.broadcast %cst_1 : f32 to vector<32x1xf32>
    %5 = arith.maximumf %3, %4 : vector<32x1xf32>
    %cst_2 = arith.constant 1.270000e+02 : f32
    %6 = vector.broadcast %cst_2 : f32 to vector<32x1xf32>
    %7 = arith.divf %5, %6 : vector<32x1xf32>
    %8 = vector.broadcast %7 : vector<32x1xf32> to vector<32x128xf32>
    %9 = arith.divf %0, %8 : vector<32x128xf32>
    %10 = math.roundeven %9 : vector<32x128xf32>
    %11 = arith.fptosi %10 : vector<32x128xf32> to vector<32x128xi8>
    %c0_3 = arith.constant 0 : index
    %c0_4 = arith.constant 0 : index
    %12 = vector.load %arg2[%c0_3, %c0_4] : memref<32x128xi8, #tpu.memory_space<vmem>>, vector<32x128xi8>
    tpu.vector_store %arg2[%c0_3, %c0_4], %11 {strides = array<i32>} : memref<32x128xi8, #tpu.memory_space<vmem>>, vector<32x128xi8>,
    %c0_5 = arith.constant 0 : index
    %c0_6 = arith.constant 0 : index
    %13 = vector.load %arg3[%c0_5, %c0_6] : memref<32x1xf32, #tpu.memory_space<vmem>>, vector<32x1xf32>
    tpu.vector_store %arg3[%c0_5, %c0_6], %7 {strides = array<i32>} : memref<32x1xf32, #tpu.memory_space<vmem>>, vector<32x1xf32>,
    return
  }
  func.func @transform_0(%arg0: i32) -> (i32, i32) {
    %c0_i32 = arith.constant 0 : i32
    %c0_i32_0 = arith.constant 0 : i32
    return %arg0, %c0_i32 : i32, i32
  }
  func.func @transform_1(%arg0: i32) -> (i32, i32) {
    %c0_i32 = arith.constant 0 : i32
    %c0_i32_0 = arith.constant 0 : i32
    return %arg0, %c0_i32 : i32, i32
  }
  func.func @transform_2(%arg0: i32) -> (i32, i32) {
    %c0_i32 = arith.constant 0 : i32
    %c0_i32_0 = arith.constant 0 : i32
    return %arg0, %c0_i32 : i32, i32
  }
}

</mosaic_0001>

<llo_original>
// kernel: tpu_custom_call.1
$region0: #{tpu_custom_call.1}
  #allocation0 [shape = 'u32[]', space=smem, size = 0x4, offset = 0x4, fixed_abs, tag = 'smem constant byte address 0x4 - core index']
  #allocation1 [shape = 'u32[144,128]{1,0:T(1,128)}', space=vmem, size = 0x12000, scoped, tag = 'internal scratch']
  %s0 = inlined_call_operand.hbm [shape: f32[32,128], index: 0, kind: input, shape index: {}]
  %s1 = inlined_call_operand.hbm [shape: s8[32,128], index: 1, kind: output, shape index: {0}]
  %s2 = inlined_call_operand.vmem [shape: f32[32,1], index: 2, kind: output, shape index: {1}]
  %3 = xla_tuple %s1, %s2
  %s4 = sld [smem:[#allocation0]]
  $region26: #{tpu_custom_call.1} parent=0
    _
  %s6 = ssub.s32 1, %s4
  %s7 = scalar_select 0, %s6, %s4
  $region1: #{tpu_custom_call.1} parent=0
    #allocation2 [shape = 'u8[16384]{0}', space=vmem, size = 0x4000, scoped, tag = 'input window, operand 0, single buffered']
    #allocation3 [shape = 's32[1]{0}', space=sflag, size = 0x4, scoped, tag = 'scoped memory for tpu_custom_call.1']
    #allocation4 [shape = 's32[1]{0}', space=sflag, size = 0x4, scoped, tag = 'scoped memory for tpu_custom_call.1']
    #allocation5 [shape = 'u8[4096]{0}', space=vmem, size = 0x1000, scoped, tag = 'output window, operand 0, single buffered']
    %8 = vsyncpa [#allocation3], 0
    %9 = vsyncpa [#allocation4], 0
    // Predicated region
    $region2: #{tpu_custom_call.1} parent=1 // pred_check
      _
    $region3: #{tpu_custom_call.1} parent=1 // pred_check_branch
      %11 = sbr.rel (0) target = $region5
    $region4: #{tpu_custom_call.1} parent=1 // pred_region
      %s13 = ssub.s32 512, 512
      %14 = vsyncadd [#allocation3], %s13
      %s15 = sshll.u32 [#allocation2], 4
      %s16 = int_to_ptr.vmem [resolvable:$true] %s15
      %21 = dma.hbm_to_vmem [thread:$0]  %s0, 512, %s16, [#allocation3], 128, 128, 8
    $region5: #{tpu_custom_call.1} parent=1 // pred_fallthru
      _
    // Predicated region
    $region6: #{tpu_custom_call.1} parent=1 // pred_check
      _
    $region7: #{tpu_custom_call.1} parent=1 // pred_check_branch
      %23 = sbr.rel (0) target = $region9
    $region8: #{tpu_custom_call.1} parent=1 // pred_region
      %24 = dma.done [#allocation3], 512
    $region9: #{tpu_custom_call.1} parent=1 // pred_fallthru
      _
    %v25 = vld [vmem:[#allocation2] sm:$0xff]
    %v26 = vld [vmem:[#allocation2 + $0x8] sm:$0xff]
    %v27 = vld [vmem:[#allocation2 + $0x10] sm:$0xff]
    %v28 = vld [vmem:[#allocation2 + $0x18] sm:$0xff]
    %v29 = vand.u32 2147483647, %v25
    %v30 = vand.u32 2147483647, %v26
    %v31 = vand.u32 2147483647, %v27
    %v32 = vand.u32 2147483647, %v28
    %33 = vmax.xlane.f32.xlu0 %v29
    %v34 = vpop.xlane.xlu0 %33
    %35 = vmax.xlane.f32.xlu0 %v30
    %v36 = vpop.xlane.xlu0 %35
    %37 = vmax.xlane.f32.xlu0 %v31
    %v38 = vpop.xlane.xlu0 %37
    %39 = vmax.xlane.f32.xlu0 %v32
    %v40 = vpop.xlane.xlu0 %39
    %v41 = vmax.f32 %v34, 1e-08
    %v42 = vmax.f32 %v36, 1e-08
    %v43 = vmax.f32 %v38, 1e-08
    %v44 = vmax.f32 %v40, 1e-08
    %v45 = vrcp.pop 127.0
    %v46 = vmul.f32 %v41, %v45
    %v47 = vmul.f32 %v42, %v45
    %v48 = vmul.f32 %v43, %v45
    %v49 = vmul.f32 %v44, %v45
    %v50 = vrcp.pop %v46
    %v51 = vmul.f32 %v25, %v50
    %v52 = vrcp.pop %v47
    %v53 = vmul.f32 %v26, %v52
    %v54 = vrcp.pop %v48
    %v55 = vmul.f32 %v27, %v54
    %v56 = vrcp.pop %v49
    %v57 = vmul.f32 %v28, %v56
    %v58 = vpack.c.f32.eXmY %v51, %v53, 312
    %v62 = vpack.c.f32.eXmY %v55, %v57, 312
    %v66 = vpack.c.b8 %v62, %v58
    %68 = vst [vmem:[#allocation5] sm:$0xff] %v66
    %vm69 = vcmask 7168
    %70 = vst.msk [vmem:[%s2] sm:$0xff] %vm69, %v46
    %71 = vst.msk [vmem:[%s2 + $0x8] sm:$0xff] %vm69, %v47
    %72 = vst.msk [vmem:[%s2 + $0x10] sm:$0xff] %vm69, %v48
    %73 = vst.msk [vmem:[%s2 + $0x18] sm:$0xff] %vm69, %v49
    // Predicated region
    $region10: #{tpu_custom_call.1} parent=1 // pred_check
      _
    $region11: #{tpu_custom_call.1} parent=1 // pred_check_branch
      %75 = sbr.rel (0) target = $region13
    $region12: #{tpu_custom_call.1} parent=1 // pred_region
      %s77 = ssub.s32 128, 128
      %78 = vsyncadd [#allocation4], %s77
      %s80 = sshll.u32 [#allocation5], 4
      %s81 = int_to_ptr.vmem [resolvable:$true] %s80
      %83 = dma.vmem_to_hbm [thread:$0]  %s81, 128, %s1, [#allocation4]
    $region13: #{tpu_custom_call.1} parent=1 // pred_fallthru
      _
    // Predicated region
    $region14: #{tpu_custom_call.1} parent=1 // pred_check
      _
    $region15: #{tpu_custom_call.1} parent=1 // pred_check_branch
      %85 = sbr.rel (0) target = $region17
    $region16: #{tpu_custom_call.1} parent=1 // pred_region
      _
    $region17: #{tpu_custom_call.1} parent=1 // pred_fallthru
      _
    // Predicated region
    $region18: #{tpu_custom_call.1} parent=1 // pred_check
      _
    $region19: #{tpu_custom_call.1} parent=1 // pred_check_branch
      %87 = sbr.rel (0) target = $region21
    $region20: #{tpu_custom_call.1} parent=1 // pred_region
      %88 = dma.done [#allocation4], 128
    $region21: #{tpu_custom_call.1} parent=1 // pred_fallthru
      _
    // Predicated region
    $region22: #{tpu_custom_call.1} parent=1 // pred_check
      _
    $region23: #{tpu_custom_call.1} parent=1 // pred_check_branch
      %90 = sbr.rel (0) target = $region25
    $region24: #{tpu_custom_call.1} parent=1 // pred_region
      _
    $region25: #{tpu_custom_call.1} parent=1 // pred_fallthru
      _
    %91 = vsyncpa [#allocation3], 1
    %92 = vsyncpa [#allocation4], 1

</llo_original>
